<compile_context>
chip_gen: v5e
topology: v5e:2x2
jax: 0.10.0
libtpu: 0.0.40
codegen_flags: <defaults>
</compile_context>

<pallas_src>
import functools

import jax
import jax.numpy as jnp
from jax.experimental import pallas as pl
from jax.experimental.pallas import tpu as pltpu


def _conv1d_im2col_kernel(x_ref, w_ref, b_ref, o_ref, xpad_ref, slab_ref, *,
                          kernel_size, pad_left, tile_l):
    # x_ref:    (C_in, L)              one batch row (batch dim squeezed)
    # w_ref:    (TCO, K*C_in)          weight tile, taps folded into contraction
    # b_ref:    (TCO, 1)               f32 bias tile
    # o_ref:    (TCO, TL)              lane-dense output tile
    # xpad_ref: (n_l + 1, C_in, TL)    zero-padded row, pre-split into L tiles
    # slab_ref: (K*C_in, TL)           im2col slab for the current tile
    co = pl.program_id(1)
    j = pl.program_id(2)
    c_in = x_ref.shape[0]
    x_len = x_ref.shape[1]

    # Build the zero-padded, tile-partitioned copy of this batch row once per
    # batch element (first (co, j) step). xpad_ref[t] holds logical padded
    # columns [t*TL, (t+1)*TL).  All offsets below are Python ints -> static.
    @pl.when(jnp.logical_and(co == 0, j == 0))
    def _():
        xpad_ref[...] = jnp.zeros_like(xpad_ref)
        n_tiles = xpad_ref.shape[0]
        for t in range(n_tiles):
            dst_lo = max(0, pad_left - t * tile_l)
            dst_hi = min(tile_l, pad_left + x_len - t * tile_l)
            if dst_hi > dst_lo:
                src_lo = t * tile_l + dst_lo - pad_left
                src_hi = t * tile_l + dst_hi - pad_left
                xpad_ref[t, :, dst_lo:dst_hi] = x_ref[:, src_lo:src_hi]

    # Current tile plus its right neighbour supply the K-1 halo.  Dynamic
    # indexing only touches the leading dim; the lane concat is 128-aligned.
    cur = xpad_ref[j]                                   # (C_in, TL)
    nxt = xpad_ref[j + 1]                               # (C_in, TL)
    win = jnp.concatenate([cur, nxt], axis=-1)          # (C_in, 2*TL)

    # im2col slab: slab[kk*C_in + ci, t] = xpad[ci, j*TL + t + kk]
    # (static lane shifts of a value + static sublane-offset stores).
    for kk in range(kernel_size):
        slab_ref[kk * c_in:(kk + 1) * c_in, :] = win[:, kk:kk + tile_l]

    # One big MXU matmul per output tile: contraction over C_in*K, f32 acc.
    acc = jnp.dot(w_ref[...], slab_ref[...], preferred_element_type=jnp.float32)
    o_ref[...] = (acc + b_ref[...]).astype(o_ref.dtype)


def _round_up(x, m):
    return (x + m - 1) // m * m


def _pick_cout_tile(c_out):
    # Prefer 128 (fits the f32 accumulator comfortably in vregs, aligned on all
    # chips); fall back to the full dim when it does not divide evenly.
    for t in (128, 256):
        if c_out % t == 0:
            return t
    return c_out


def conv1d_pallas(x, weight, bias, *, padding=0, compute_dtype=None, tile_l=None):
    """x: (N, C_in, L), weight: (C_out, C_in, K), bias: (C_out,)."""
    n, c_in, length = x.shape
    c_out, c_in_w, k = weight.shape
    assert c_in == c_in_w, "channel mismatch"
    l_out = length + 2 * padding - k + 1
    assert l_out > 0, "output length must be positive"

    out_dtype = x.dtype
    if compute_dtype is None:
        compute_dtype = x.dtype

    # Lane-dense L tiling (multiple of 128, 512 sweet spot for larger L).
    if tile_l is None:
        tile_l = min(512, _round_up(l_out, 128))
    assert tile_l % 128 == 0
    assert k - 1 <= tile_l, "kernel taps must fit inside one halo tile"
    n_l = pl.cdiv(l_out, tile_l)
    l_out_pad = n_l * tile_l

    tco = _pick_cout_tile(c_out)
    n_co = c_out // tco

    # Fold taps into the contraction dim: w2[co, kk*C_in + ci] = w[co, ci, kk].
    w2 = jnp.transpose(weight, (0, 2, 1)).reshape(c_out, k * c_in)
    w2 = w2.astype(compute_dtype)
    bias2 = bias.astype(jnp.float32).reshape(c_out, 1)
    x_c = x.astype(compute_dtype)

    kernel = functools.partial(
        _conv1d_im2col_kernel, kernel_size=k, pad_left=padding, tile_l=tile_l)

    # Rough VMEM budget -> scoped limit (cap 64 MiB so it is valid on v7x too).
    c_item = jnp.dtype(compute_dtype).itemsize
    o_item = jnp.dtype(out_dtype).itemsize
    vmem_need = (
        2 * c_in * length * c_item              # input row (double-buffered)
        + 2 * tco * k * c_in * c_item           # weight tile
        + 2 * tco * 4                           # bias tile
        + 2 * tco * tile_l * o_item             # output tile (double-buffered)
        + (n_l + 1) * c_in * tile_l * c_item    # padded-row scratch
        + k * c_in * tile_l * c_item            # im2col slab scratch
        + tco * tile_l * 4)                     # f32 matmul result
    vmem_limit = int(min(64 * 2**20, max(32 * 2**20, 2 * vmem_need)))

    cost = pl.CostEstimate(
        flops=2 * n * c_out * k * c_in * l_out_pad,
        transcendentals=0,
        bytes_accessed=int(x_c.size * c_item + w2.size * c_item
                           + bias2.size * 4 + n * c_out * l_out_pad * o_item))

    out = pl.pallas_call(
        kernel,
        out_shape=jax.ShapeDtypeStruct((n, c_out, l_out_pad), out_dtype),
        grid_spec=pltpu.PrefetchScalarGridSpec(
            num_scalar_prefetch=0,
            # Grid order (batch, c_out, l): weight/bias tiles resident along the
            # inner L axis; the input row resident across (c_out, l).
            grid=(n, n_co, n_l),
            in_specs=[
                pl.BlockSpec((None, c_in, length), lambda b, co, j: (b, 0, 0)),
                pl.BlockSpec((tco, k * c_in), lambda b, co, j: (co, 0)),
                pl.BlockSpec((tco, 1), lambda b, co, j: (co, 0)),
            ],
            out_specs=pl.BlockSpec((None, tco, tile_l),
                                   lambda b, co, j: (b, co, j)),
            scratch_shapes=[
                pltpu.VMEM((n_l + 1, c_in, tile_l), compute_dtype),
                pltpu.VMEM((k * c_in, tile_l), compute_dtype),
            ],
        ),
        compiler_params=pltpu.CompilerParams(
            # c_out / l axes are "arbitrary": the padded-row scratch is filled
            # once per batch element and reused across them.
            dimension_semantics=("parallel", "arbitrary", "arbitrary"),
            vmem_limit_bytes=vmem_limit),
        cost_estimate=cost,
    )(x_c, w2, bias2)

    # Drop the lane-alignment padding (layout plumbing, not compute).
    return out[:, :, :l_out]


class DepthwiseConv1dPallas:
    """Mirrors DepthwiseConv1d(in_dim, out_dim, kernel_size, padding).

    (The reference module is a plain groups=1 nn.Conv1d despite its name.)
    """

    def __init__(self, in_dim, out_dim, kernel_size=32, padding=0, key=None):
        self.padding = padding
        if key is None:
            key = jax.random.PRNGKey(0)
        kw, kb = jax.random.split(key)
        fan_in = in_dim * kernel_size
        bound = 1.0 / float(jnp.sqrt(fan_in))
        self.weight = jax.random.uniform(
            kw, (out_dim, in_dim, kernel_size), jnp.float32, -bound, bound)
        self.bias = jax.random.uniform(kb, (out_dim,), jnp.float32, -bound, bound)

    def __call__(self, x, compute_dtype=None):
        return conv1d_pallas(x, self.weight, self.bias,
                             padding=self.padding, compute_dtype=compute_dtype)


if __name__ == "__main__":
    def reference(x, w, b, padding):
        out = jax.lax.conv_general_dilated(
            x, w, window_strides=(1,), padding=[(padding, padding)],
            dimension_numbers=("NCH", "OIH", "NCH"),
            precision=jax.lax.Precision.HIGHEST)
        return out + b.reshape(1, -1, 1)

    key = jax.random.PRNGKey(0)
    k1, k2, k3 = jax.random.split(key, 3)

    # Test 1: small demo shapes, no padding, f32.
    batch, in_dim, out_dim, ksz, length = 2, 4, 8, 4, 16
    x = jax.random.normal(k1, (batch, in_dim, length), jnp.float32)
    w = jax.random.uniform(k2, (out_dim, in_dim, ksz), jnp.float32, -0.5, 0.5)
    b = jax.random.uniform(k3, (out_dim,), jnp.float32, -0.5, 0.5)

    out = jax.block_until_ready(conv1d_pallas(x, w, b, padding=0))
    ref = reference(x, w, b, 0)
    assert out.shape == ref.shape == (batch, out_dim, length - ksz + 1)
    assert jnp.allclose(out, ref, atol=1e-4, rtol=1e-4)

    # Test 2: conv padding path (in-kernel zero pad, no wrapper jnp.pad).
    out_p = jax.block_until_ready(conv1d_pallas(x, w, b, padding=3))
    ref_p = reference(x, w, b, 3)
    assert out_p.shape == ref_p.shape
    assert jnp.allclose(out_p, ref_p, atol=1e-4, rtol=1e-4)

    # Test 3: module-default K=32, multiple lane-dense L tiles (halo crossing).
    in2, outd2, ksz2, len2, pad2 = 8, 16, 32, 300, 16
    k4, k5, k6 = jax.random.split(k1, 3)
    x2 = jax.random.normal(k4, (batch, in2, len2), jnp.float32)
    w2 = jax.random.uniform(k5, (outd2, in2, ksz2), jnp.float32, -0.2, 0.2)
    b2 = jax.random.uniform(k6, (outd2,), jnp.float32, -0.2, 0.2)
    out2 = jax.block_until_ready(conv1d_pallas(x2, w2, b2, padding=pad2, tile_l=128))
    ref2 = reference(x2, w2, b2, pad2)
    assert out2.shape == ref2.shape == (batch, outd2, len2 + 2 * pad2 - ksz2 + 1)
    assert jnp.allclose(out2, ref2, atol=2e-4, rtol=2e-4)

    # Test 4: bf16 compute (v6e/v7x path), f32 accumulation + f32 output.
    out_bf = jax.block_until_ready(
        conv1d_pallas(x, w, b, padding=0, compute_dtype=jnp.bfloat16))
    assert jnp.allclose(out_bf, ref, atol=5e-2, rtol=5e-2)

    # Module-style wrapper (mirrors DepthwiseConv1d.forward).
    module = DepthwiseConv1dPallas(in_dim, out_dim, kernel_size=ksz, padding=1,
                                   key=jax.random.PRNGKey(7))
    mod_out = jax.block_until_ready(module(x))
    mod_ref = reference(x, module.weight, module.bias, 1)
    assert jnp.allclose(mod_out, mod_ref, atol=1e-4, rtol=1e-4)

    print("KERNEL_OK")
</pallas_src>

<mosaic_0001>
module attributes {stable_mosaic.version = 11 : i64} {
  func.func @_conv1d_im2col_kernel(%arg0: i32, %arg1: i32, %arg2: i32, %arg3: memref<1x4x16xf32, #tpu.memory_space<vmem>>, %arg4: memref<8x16xf32, #tpu.memory_space<vmem>>, %arg5: memref<8x1xf32, #tpu.memory_space<vmem>>, %arg6: memref<1x8x128xf32, #tpu.memory_space<vmem>>, %arg7: memref<2x4x128xf32, #tpu.memory_space<vmem>>, %arg8: memref<16x128xf32, #tpu.memory_space<vmem>>) attributes {dimension_semantics = [#tpu.dimension_semantics<parallel>, #tpu.dimension_semantics<arbitrary>, #tpu.dimension_semantics<arbitrary>], iteration_bounds = array<i64: 2, 1, 1>, scalar_prefetch = 0 : i64, scratch_operands = 2 : i64, tpu.core_type = #tpu.core_type<tc>, window_params = [{transform_indices = @transform_0, window_bounds = array<i64: 1, 4, 16>}, {transform_indices = @transform_1, window_bounds = array<i64: 8, 16>}, {transform_indices = @transform_2, window_bounds = array<i64: 8, 1>}, {transform_indices = @transform_3, window_bounds = array<i64: 1, 8, 128>}]} {
    %c0_i32 = arith.constant 0 : i32
    %0 = arith.cmpi eq, %arg1, %c0_i32 : i32
    %c0_i32_0 = arith.constant 0 : i32
    %1 = arith.cmpi eq, %arg2, %c0_i32_0 : i32
    %2 = arith.andi %0, %1 : i1
    %3 = arith.extui %2 : i1 to i32
    %c0_i32_1 = arith.constant 0 : i32
    %4 = arith.cmpi ne, %3, %c0_i32_1 : i32
    scf.if %4 {
      %cst_19 = arith.constant 0.000000e+00 : f32
      %30 = vector.broadcast %cst_19 : f32 to vector<2x4x128xf32>
      %c0_20 = arith.constant 0 : index
      %c0_21 = arith.constant 0 : index
      %c0_22 = arith.constant 0 : index
      %31 = vector.load %arg7[%c0_20, %c0_21, %c0_22] : memref<2x4x128xf32, #tpu.memory_space<vmem>>, vector<2x4x128xf32>
      tpu.vector_store %arg7[%c0_20, %c0_21, %c0_22], %30 {strides = array<i32>} : memref<2x4x128xf32, #tpu.memory_space<vmem>>, vector<2x4x128xf32>,
      %c0_23 = arith.constant 0 : index
      %c0_24 = arith.constant 0 : index
      %c0_25 = arith.constant 0 : index
      %32 = vector.load %arg3[%c0_23, %c0_24, %c0_25] : memref<1x4x16xf32, #tpu.memory_space<vmem>>, vector<1x4x16xf32>
      %33 = vector.shape_cast %32 : vector<1x4x16xf32> to vector<4x16xf32>
      %c0_26 = arith.constant 0 : index
      %c0_27 = arith.constant 0 : index
      %c0_28 = arith.constant 0 : index
      %34 = vector.load %arg7[%c0_26, %c0_27, %c0_28] : memref<2x4x128xf32, #tpu.memory_space<vmem>>, vector<1x4x16xf32>
      %35 = vector.shape_cast %34 : vector<1x4x16xf32> to vector<4x16xf32>
      %36 = vector.shape_cast %33 : vector<4x16xf32> to vector<1x4x16xf32>
      tpu.vector_store %arg7[%c0_26, %c0_27, %c0_28], %36 {strides = array<i32>} : memref<2x4x128xf32, #tpu.memory_space<vmem>>, vector<1x4x16xf32>,
    } else {
    }
    %5 = arith.index_cast %arg2 : i32 to index
    %c0 = arith.constant 0 : index
    %c0_2 = arith.constant 0 : index
    %6 = vector.load %arg7[%5, %c0, %c0_2] : memref<2x4x128xf32, #tpu.memory_space<vmem>>, vector<1x4x128xf32>
    %7 = vector.shape_cast %6 : vector<1x4x128xf32> to vector<4x128xf32>
    %c1_i32 = arith.constant 1 : i32
    %8 = arith.addi %arg2, %c1_i32 : i32
    %9 = arith.index_cast %8 : i32 to index
    %c0_3 = arith.constant 0 : index
    %c0_4 = arith.constant 0 : index
    %10 = vector.load %arg7[%9, %c0_3, %c0_4] : memref<2x4x128xf32, #tpu.memory_space<vmem>>, vector<1x4x128xf32>
    %11 = vector.shape_cast %10 : vector<1x4x128xf32> to vector<4x128xf32>
    %12 = tpu.concatenate %7, %11 in 1 : vector<4x128xf32>, vector<4x128xf32> -> vector<4x256xf32>
    %13 = vector.extract_strided_slice %12 {offsets = [0, 0], sizes = [4, 128], strides = [1, 1]} : vector<4x256xf32> to vector<4x128xf32>
    %c0_5 = arith.constant 0 : index
    %c0_6 = arith.constant 0 : index
    %14 = vector.load %arg8[%c0_5, %c0_6] : memref<16x128xf32, #tpu.memory_space<vmem>>, vector<4x128xf32>
    tpu.vector_store %arg8[%c0_5, %c0_6], %13 {strides = array<i32>} : memref<16x128xf32, #tpu.memory_space<vmem>>, vector<4x128xf32>,
    %15 = vector.extract_strided_slice %12 {offsets = [0, 1], sizes = [4, 128], strides = [1, 1]} : vector<4x256xf32> to vector<4x128xf32>
    %c4 = arith.constant 4 : index
    %c0_7 = arith.constant 0 : index
    %16 = vector.load %arg8[%c4, %c0_7] : memref<16x128xf32, #tpu.memory_space<vmem>>, vector<4x128xf32>
    tpu.vector_store %arg8[%c4, %c0_7], %15 {strides = array<i32>} : memref<16x128xf32, #tpu.memory_space<vmem>>, vector<4x128xf32>,
    %17 = vector.extract_strided_slice %12 {offsets = [0, 2], sizes = [4, 128], strides = [1, 1]} : vector<4x256xf32> to vector<4x128xf32>
    %c8 = arith.constant 8 : index
    %c0_8 = arith.constant 0 : index
    %18 = vector.load %arg8[%c8, %c0_8] : memref<16x128xf32, #tpu.memory_space<vmem>>, vector<4x128xf32>
    tpu.vector_store %arg8[%c8, %c0_8], %17 {strides = array<i32>} : memref<16x128xf32, #tpu.memory_space<vmem>>, vector<4x128xf32>,
    %19 = vector.extract_strided_slice %12 {offsets = [0, 3], sizes = [4, 128], strides = [1, 1]} : vector<4x256xf32> to vector<4x128xf32>
    %c12 = arith.constant 12 : index
    %c0_9 = arith.constant 0 : index
    %20 = vector.load %arg8[%c12, %c0_9] : memref<16x128xf32, #tpu.memory_space<vmem>>, vector<4x128xf32>
    tpu.vector_store %arg8[%c12, %c0_9], %19 {strides = array<i32>} : memref<16x128xf32, #tpu.memory_space<vmem>>, vector<4x128xf32>,
    %c0_10 = arith.constant 0 : index
    %c0_11 = arith.constant 0 : index
    %21 = vector.load %arg4[%c0_10, %c0_11] : memref<8x16xf32, #tpu.memory_space<vmem>>, vector<8x16xf32>
    %c0_12 = arith.constant 0 : index
    %c0_13 = arith.constant 0 : index
    %22 = vector.load %arg8[%c0_12, %c0_13] : memref<16x128xf32, #tpu.memory_space<vmem>>, vector<16x128xf32>
    %cst = arith.constant dense<0.000000e+00> : vector<8x128xf32>
    %23 = tpu.matmul %21, %22, %cst {dimension_numbers = #tpu.dot_dimension_numbers<[1], [0], [0], [1], [0, 0, 1, 1], [], []>} : vector<8x16xf32>, vector<16x128xf32>, vector<8x128xf32> -> vector<8x128xf32>
    %c0_14 = arith.constant 0 : index
    %c0_15 = arith.constant 0 : index
    %24 = vector.load %arg5[%c0_14, %c0_15] : memref<8x1xf32, #tpu.memory_space<vmem>>, vector<8x1xf32>
    %25 = vector.broadcast %24 : vector<8x1xf32> to vector<8x128xf32>
    %26 = arith.addf %23, %25 : vector<8x128xf32>
    %c0_16 = arith.constant 0 : index
    %c0_17 = arith.constant 0 : index
    %c0_18 = arith.constant 0 : index
    %27 = vector.load %arg6[%c0_16, %c0_17, %c0_18] : memref<1x8x128xf32, #tpu.memory_space<vmem>>, vector<1x8x128xf32>
    %28 = vector.shape_cast %27 : vector<1x8x128xf32> to vector<8x128xf32>
    %29 = vector.shape_cast %26 : vector<8x128xf32> to vector<1x8x128xf32>
    tpu.vector_store %arg6[%c0_16, %c0_17, %c0_18], %29 {strides = array<i32>} : memref<1x8x128xf32, #tpu.memory_space<vmem>>, vector<1x8x128xf32>,
    return
  }
  func.func @transform_0(%arg0: i32, %arg1: i32, %arg2: i32) -> (i32, i32, i32) {
    %c0_i32 = arith.constant 0 : i32
    %c0_i32_0 = arith.constant 0 : i32
    %c0_i32_1 = arith.constant 0 : i32
    return %arg0, %c0_i32, %c0_i32_0 : i32, i32, i32
  }
  func.func @transform_1(%arg0: i32, %arg1: i32, %arg2: i32) -> (i32, i32) {
    %c0_i32 = arith.constant 0 : i32
    %c0_i32_0 = arith.constant 0 : i32
    return %arg1, %c0_i32 : i32, i32
  }
  func.func @transform_2(%arg0: i32, %arg1: i32, %arg2: i32) -> (i32, i32) {
    %c0_i32 = arith.constant 0 : i32
    %c0_i32_0 = arith.constant 0 : i32
    return %arg1, %c0_i32 : i32, i32
  }
  func.func @transform_3(%arg0: i32, %arg1: i32, %arg2: i32) -> (i32, i32, i32) {
    %c0_i32 = arith.constant 0 : i32
    return %arg0, %arg1, %arg2 : i32, i32, i32
  }
}

</mosaic_0001>

<llo_original>
// kernel: tpu_custom_call.1
$region0: #{tpu_custom_call.1}
  #allocation0 [shape = 'u32[]', space=smem, size = 0x4, offset = 0x4, fixed_abs, tag = 'smem constant byte address 0x4 - core index']
  #allocation1 [shape = 'u32[72,128]{1,0:T(1,128)}', space=vmem, size = 0x9000, scoped, tag = 'internal scratch']
  #allocation2 [shape = 'f32[2,4,128]{2,1,0:T(4,128)}', space=vmem, size = 0x1000, scoped, tag = 'scratch operand']
  #allocation3 [shape = 'f32[16,128]{1,0:T(8,128)}', space=vmem, size = 0x2000, scoped, tag = 'scratch operand']
  %s0 = inlined_call_operand.vmem [shape: f32[2,4,16], index: 0, kind: input, shape index: {}]
  %s1 = inlined_call_operand.hbm [shape: f32[8,16], index: 1, kind: input, shape index: {}]
  %s2 = inlined_call_operand.vmem [shape: f32[8,1], index: 2, kind: input, shape index: {}]
  %s3 = inlined_call_operand.hbm [shape: f32[2,8,128], index: 3, kind: output, shape index: {}]
  %s4 = sld [smem:[#allocation0]]
  $region53: #{tpu_custom_call.1} parent=0
    _
  %s6 = ssub.s32 1, %s4
  %s7 = scalar_select 0, %s6, %s4
  $region1: #{tpu_custom_call.1} parent=0
    #allocation4 [shape = 'u8[4096]{0}', space=vmem, size = 0x1000, scoped, tag = 'input window, operand 1, single buffered']
    #allocation5 [shape = 's32[2]{0}', space=sflag, size = 0x8, scoped, tag = 'scoped memory for tpu_custom_call.1']
    #allocation6 [shape = 's32[2]{0}', space=sflag, size = 0x8, scoped, tag = 'scoped memory for tpu_custom_call.1']
    #allocation7 [shape = 'u8[8192]{0}', space=vmem, size = 0x2000, scoped, tag = 'output window, operand 0']
    %8 = vsyncpa [#allocation5], 0
    %9 = vsyncpa [#allocation6], 0
    %s10 = scalar_lea.sflag [#allocation6], 1
    %11 = vsyncpa %s10, 0
    loop: start=0, step=1, limit=4
    $region2: #{tpu_custom_call.1} parent=1 // loop_pre_header
      _
    $region3: #{tpu_custom_call.1} parent=1 // loop_header
      %s13 = sphi 0, %s17
      %p14 = scmp.ge.s32.totalorder %s13, 4
      %s20 = sphi 0, %s39
      %s21 = sphi 0, %s35
      %s22 = sphi 0, %s31
      %s23 = sphi 0, %s20
      %s24 = sphi 0, %s21
      %s25 = sphi 0, %s22
      %s26 = sphi 0, %s23
      %s27 = sphi 0, %s24
      %s28 = sphi 0, %s25
      %s42 = sphi 0, %s44
      %s45 = sphi 0, %s42
      %s46 = sphi 0, %s45
      %s62 = sphi 0, %s46
      %s68 = sphi 0, %s70
      %s71 = sphi 0, %s68
      %s72 = sphi 0, %s71
      %s88 = sphi 0, %s72
      %s94 = sphi 0, %s96
      %s97 = sphi 0, %s94
      %s98 = sphi 0, %s97
      %s114 = sphi 0, %s98
      %s124 = sphi 0, %s126
      %s127 = sphi 0, %s124
      %s128 = sphi 0, %s127
      %s144 = sphi 0, %s128
    $region4: #{tpu_custom_call.1} parent=1 // loop_header_branch
      %16 = sbr.rel (%p14) target = $region8
    $region5: #{tpu_custom_call.1} parent=1 // loop_body
      %s18 = ssub.s32 %s13, 1
      %s19 = ssub.s32 %s13, 2
      %s29 = sadd.s32 1, %s22
      %p30 = scmp.ge.s32.totalorder %s29, 1
      %s31 = scalar_select %p30, 0, %s29
      %s32 = sadd.s32 1, %s21
      %s33 = scalar_select %p30, %s32, %s21
      %p34 = scmp.ge.s32.totalorder %s33, 1
      %s35 = scalar_select %p34, 0, %s33
      %s36 = sadd.s32 1, %s20
      %s37 = scalar_select %p34, %s36, %s20
      %p38 = scmp.ge.s32.totalorder %s37, 2
      %s39 = scalar_select %p38, 0, %s37
      %s40 = ssub.s32 %s20, %s39
      %p41 = scmp.eq.s32.totalorder %s40, 0
      %s43 = sadd.s32 %s42, 1
      %s44 = scalar_select %p41, %s42, %s43
      %p47 = pneg %p41
      %p48 = scmp.eq.s32.totalorder %s13, 1
      %p49 = por %p47, %p48
      %p50 = scmp.ne.s32.totalorder %s42, %s45
      %p51 = scmp.eq.s32.totalorder %s13, 0
      %p52 = por %p50, %p51
      %p53 = scmp.ne.s32.totalorder %s42, %s45
      %p54 = scmp.eq.s32.totalorder %s18, 1
      %p55 = por %p53, %p54
      %p56 = scmp.ne.s32.totalorder %s45, %s46
      %p57 = scmp.eq.s32.totalorder %s18, 0
      %p58 = por %p56, %p57
      %p59 = scmp.ne.s32.totalorder %s45, %s46
      %p60 = scmp.eq.s32.totalorder %s19, 1
      %p61 = por %p59, %p60
      %p63 = scmp.ne.s32.totalorder %s46, %s62
      %p64 = scmp.eq.s32.totalorder %s19, 0
      %p65 = por %p63, %p64
      %s66 = ssub.s32 %s21, %s35
      %p67 = scmp.eq.s32.totalorder %s66, 0
      %s69 = sadd.s32 %s68, 1
      %s70 = scalar_select %p67, %s68, %s69
      %p73 = pneg %p67
      %p74 = scmp.eq.s32.totalorder %s13, 1
      %p75 = por %p73, %p74
      %p76 = scmp.ne.s32.totalorder %s68, %s71
      %p77 = scmp.eq.s32.totalorder %s13, 0
      %p78 = por %p76, %p77
      %p79 = scmp.ne.s32.totalorder %s68, %s71
      %p80 = scmp.eq.s32.totalorder %s18, 1
      %p81 = por %p79, %p80
      %p82 = scmp.ne.s32.totalorder %s71, %s72
      %p83 = scmp.eq.s32.totalorder %s18, 0
      %p84 = por %p82, %p83
      %p85 = scmp.ne.s32.totalorder %s71, %s72
      %p86 = scmp.eq.s32.totalorder %s19, 1
      %p87 = por %p85, %p86
      %p89 = scmp.ne.s32.totalorder %s72, %s88
      %p90 = scmp.eq.s32.totalorder %s19, 0
      %p91 = por %p89, %p90
      %s92 = ssub.s32 %s21, %s35
      %p93 = scmp.eq.s32.totalorder %s92, 0
      %s95 = sadd.s32 %s94, 1
      %s96 = scalar_select %p93, %s94, %s95
      %p99 = pneg %p93
      %p100 = scmp.eq.s32.totalorder %s13, 1
      %p101 = por %p99, %p100
      %p102 = scmp.ne.s32.totalorder %s94, %s97
      %p103 = scmp.eq.s32.totalorder %s13, 0
      %p104 = por %p102, %p103
      %p105 = scmp.ne.s32.totalorder %s94, %s97
      %p106 = scmp.eq.s32.totalorder %s18, 1
      %p107 = por %p105, %p106
      %p108 = scmp.ne.s32.totalorder %s97, %s98
      %p109 = scmp.eq.s32.totalorder %s18, 0
      %p110 = por %p108, %p109
      %p111 = scmp.ne.s32.totalorder %s97, %s98
      %p112 = scmp.eq.s32.totalorder %s19, 1
      %p113 = por %p111, %p112
      %p115 = scmp.ne.s32.totalorder %s98, %s114
      %p116 = scmp.eq.s32.totalorder %s19, 0
      %p117 = por %p115, %p116
      %s118 = ssub.s32 %s20, %s39
      %s119 = ssub.s32 %s21, %s35
      %s120 = sor.u32 %s118, %s119
      %s121 = ssub.s32 %s22, %s31
      %s122 = sor.u32 %s120, %s121
      %p123 = scmp.eq.s32.totalorder %s122, 0
      %s125 = sadd.s32 %s124, 1
      %s126 = scalar_select %p123, %s124, %s125
      %p129 = pneg %p123
      %p130 = scmp.eq.s32.totalorder %s13, 1
      %p131 = por %p129, %p130
      %p132 = scmp.ne.s32.totalorder %s124, %s127
      %p133 = scmp.eq.s32.totalorder %s13, 0
      %p134 = por %p132, %p133
      %p135 = scmp.ne.s32.totalorder %s124, %s127
      %p136 = scmp.eq.s32.totalorder %s18, 1
      %p137 = por %p135, %p136
      %p138 = scmp.ne.s32.totalorder %s127, %s128
      %p139 = scmp.eq.s32.totalorder %s18, 0
      %p140 = por %p138, %p139
      %p141 = scmp.ne.s32.totalorder %s127, %s128
      %p142 = scmp.eq.s32.totalorder %s19, 1
      %p143 = por %p141, %p142
      %p145 = scmp.ne.s32.totalorder %s128, %s144
      %p146 = scmp.eq.s32.totalorder %s19, 0
      %p147 = por %p145, %p146
      %p148 = scmp.le.s32.totalorder 1, %s13
      %p149 = scmp.lt.s32.totalorder %s13, 3
      %p150 = pnand %p148, %p149
      %p151 = pneg %p150
      // Predicated region
      $region9: #{tpu_custom_call.1} parent=5 // pred_check
        _
      $region10: #{tpu_custom_call.1} parent=5 // pred_check_branch
        %153 = sbr.rel (%p150) target = $region12
      $region11: #{tpu_custom_call.1} parent=5 // pred_region
        %s154 = ssub.s32 %s13, 1
        // Predicated region
        $region13: #{tpu_custom_call.1} parent=11 // pred_check
          %p155 = pneg %p84
        $region14: #{tpu_custom_call.1} parent=11 // pred_check_branch
          %157 = sbr.rel (%p155) target = $region16
        $region15: #{tpu_custom_call.1} parent=11 // pred_region
          %159 = vsyncadd [#allocation5], 0
          %s160 = smul.addr %s24, 8
          %s161 = scalar_lea.hbm %s1, %s160
          %s163 = sshll.u32 %s161, 4
          %s164 = int_to_ptr.hbm [resolvable:$true] %s163
          %s165 = sshll.u32 [#allocation4], 4
          %s166 = int_to_ptr.vmem [resolvable:$true] %s165
          %168 = dma.hbm_to_vmem [thread:$0]  %s164, 128, %s166, [#allocation5]
        $region16: #{tpu_custom_call.1} parent=11 // pred_fallthru
          _
        // Predicated region
        $region17: #{tpu_custom_call.1} parent=11 // pred_check
          %p169 = pneg %p110
        $region18: #{tpu_custom_call.1} parent=11 // pred_check_branch
          %171 = sbr.rel (%p169) target = $region20
        $region19: #{tpu_custom_call.1} parent=11 // pred_region
          %p172 = scmp.lt.s32.totalorder %s24, 0
          %s173 = scalar_select %p172, %s24, 0
          %s174 = smul.addr %s173, 8
          %s175 = scalar_lea.vmem %s2, %s174
        $region20: #{tpu_custom_call.1} parent=11 // pred_fallthru
          _
      $region12: #{tpu_custom_call.1} parent=5 // pred_fallthru
        _
      %p176 = scmp.lt.s32.totalorder %s13, 2
      // Predicated region
      $region21: #{tpu_custom_call.1} parent=5 // pred_check
        %p177 = pneg %p176
      $region22: #{tpu_custom_call.1} parent=5 // pred_check_branch
        %179 = sbr.rel (%p177) target = $region24
      $region23: #{tpu_custom_call.1} parent=5 // pred_region
        // Predicated region
        $region25: #{tpu_custom_call.1} parent=23 // pred_check
          %p180 = pneg %p52
        $region26: #{tpu_custom_call.1} parent=23 // pred_check_branch
          %182 = sbr.rel (%p180) target = $region28
        $region27: #{tpu_custom_call.1} parent=23 // pred_region
          %p183 = scmp.lt.s32.totalorder %s20, 1
          %s184 = scalar_select %p183, %s20, 1
          %s185 = smul.addr %s184, 4
          %s186 = scalar_lea.vmem %s0, %s185
        $region28: #{tpu_custom_call.1} parent=23 // pred_fallthru
          _
      $region24: #{tpu_custom_call.1} parent=5 // pred_fallthru
        _
      %p187 = scmp.le.s32.totalorder 1, %s13
      %p188 = scmp.lt.s32.totalorder %s13, 3
      %p189 = pnand %p187, %p188
      %p190 = pneg %p189
      // Predicated region
      $region29: #{tpu_custom_call.1} parent=5 // pred_check
        _
      $region30: #{tpu_custom_call.1} parent=5 // pred_check_branch
        %192 = sbr.rel (%p189) target = $region32
      $region31: #{tpu_custom_call.1} parent=5 // pred_region
        %s193 = ssub.s32 %s13, 1
        // Predicated region
        $region33: #{tpu_custom_call.1} parent=31 // pred_check
          %p194 = pneg %p84
        $region34: #{tpu_custom_call.1} parent=31 // pred_check_branch
          %196 = sbr.rel (%p194) target = $region36
        $region35: #{tpu_custom_call.1} parent=31 // pred_region
          %198 = dma.done [#allocation5], 128
        $region36: #{tpu_custom_call.1} parent=31 // pred_fallthru
          _
        %p199 = scmp.lt.s32.totalorder %s23, 1
        %s200 = scalar_select %p199, %s23, 1
        %s201 = smul.addr %s200, 4
        %s202 = scalar_lea.vmem %s0, %s201
        %p203 = pneg %p58
        %p204 = pneg %p55
        %p205 = pneg %p84
        %p206 = pneg %p81
        %p207 = scmp.lt.s32.totalorder %s24, 0
        %s208 = scalar_select %p207, %s24, 0
        %s209 = smul.addr %s208, 8
        %s210 = scalar_lea.vmem %s2, %s209
        %p211 = pneg %p110
        %p212 = pneg %p107
        %p213 = pneg %p140
        %p214 = pneg %p137
        %s215 = sand.u32 %s127, 1
        %s216 = scalar_lea.sflag [#allocation6], %s215
        %s217 = sand.u32 %s127, 1
        %s218 = smul.addr %s217, 8
        %s219 = scalar_lea.vmem [#allocation7], %s218
        %p220 = scmp.lt.s32.totalorder %s23, 1
        %s221 = scalar_select %p220, %s23, 1
        %s222 = smul.addr %s221, 4
        %s223 = scalar_lea.vmem %s0, %s222
        %p224 = scmp.lt.s32.totalorder %s24, 0
        %s225 = scalar_select %p224, %s24, 0
        %s226 = smul.addr %s225, 8
        %s227 = scalar_lea.vmem %s2, %s226
        %p228 = scmp.eq.s32.totalorder %s24, 0
        %p229 = scmp.eq.s32.totalorder %s25, 0
        %p230 = pnand %p228, %p229
        %p231 = pneg %p230
        // Predicated region
        $region37: #{tpu_custom_call.1} parent=31 // pred_check
          _
        $region38: #{tpu_custom_call.1} parent=31 // pred_check_branch
          %233 = sbr.rel (%p230) target = $region40
        $region39: #{tpu_custom_call.1} parent=31 // pred_region
          %234 = vst [vmem:[#allocation2] sm:$0xf] 0.0
          %235 = vst [vmem:[#allocation2 + $0x4] sm:$0xf] 0.0
          %v236 = vld [vmem:[%s223] sm:$0xf]
          %vm237 = vcmask 125952
          %238 = vst.msk [vmem:[#allocation2] sm:$0xf] %vm237, %v236
        $region40: #{tpu_custom_call.1} parent=31 // pred_fallthru
          _
        %s239 = smul.u32 %s25, 4
        %s240 = scalar_lea.vmem [#allocation2], %s239
        %v241 = vld [vmem:[%s240] sm:$0xf]
        %s242 = sadd.s32 %s25, 1
        %s243 = smul.u32 %s242, 4
        %s244 = scalar_lea.vmem [#allocation2], %s243
        %v245 = vld [vmem:[%s244] sm:$0xf]
        %246 = vst [vmem:[#allocation3] sm:$0xf] %v241
        %249 = vrot.lane.b32.xlu0 %v241, 127
        %v250 = vpop.permute.xlu0 %249
        %251 = vrot.lane.b32.xlu0 %v245, 127
        %v252 = vpop.permute.xlu0 %251
        %vm253 = vcmask 1039360
        %v254 = vsel %vm253, %v250, %v252
        %256 = vst [vmem:[#allocation3 + $0x4] sm:$0xf] %v254
        %257 = vrot.lane.b32.xlu0 %v241, 126
        %v258 = vpop.permute.xlu0 %257
        %259 = vrot.lane.b32.xlu0 %v245, 126
        %v260 = vpop.permute.xlu0 %259
        %vm261 = vcmask 1031168
        %v262 = vsel %vm261, %v258, %v260
        %264 = vst [vmem:[#allocation3 + $0x8] sm:$0xf] %v262
        %265 = vrot.lane.b32.xlu0 %v241, 125
        %v266 = vpop.permute.xlu0 %265
        %267 = vrot.lane.b32.xlu0 %v245, 125
        %v268 = vpop.permute.xlu0 %267
        %vm269 = vcmask 1022976
        %v270 = vsel %vm269, %v266, %v268
        %272 = vst [vmem:[#allocation3 + $0xc] sm:$0xf] %v270
        %v273 = vld [vmem:[#allocation4] sm:$0xff]
        %v274 = vld [vmem:[#allocation3] sm:$0xff]
        %v275 = vld [vmem:[#allocation3 + $0x8] sm:$0xff]
        %v276 = vld [vmem:[%s227] sm:$0xff]
        %278 = vset.pattern.permute.xlu0 0
        %279 = vperm.xlu0 %278, %v276
        %v280 = vpop.permute.xlu0 %279
        %vm282 = vcmask 130048
        %v284 = vsel %vm282, %v273, 0
        %286 = vmatpush.msra.mxu0 0.0
        %287 = vmatpush.msra.mxu0 0.0
        %288 = vmatpush.msra.mxu0 0.0
        %289 = vmatpush.msra.mxu0 0.0
        %290 = vmatpush.msra.mxu0 0.0
        %291 = vmatpush.msra.mxu0 0.0
        %292 = vmatpush.msra.mxu0 0.0
        %293 = vmatpush.msra.mxu0 0.0
        %294 = vmatpush.msra.mxu0 0.0
        %295 = vmatpush.msra.mxu0 0.0
        %296 = vmatpush.msra.mxu0 0.0
        %297 = vmatpush.msra.mxu0 0.0
        %298 = vmatpush.msra.mxu0 0.0
        %299 = vmatpush.msra.mxu0 0.0
        %300 = vmatpush.msra.mxu0 %v275
        %301 = vmatpush.msra.mxu0 %v274
        %302 = vmatmul.f32.gmra.mxu0 %v284
        %v303 = vpop.f32.mrf.mxu0
        %v304 = vadd.f32 %v280, %v303
        %305 = vdwg.mxu0
        %306 = vst [vmem:[%s219] sm:$0xff] %v304
        %s307 = sand.u32 %s127, 1
        %s308 = scalar_lea.sflag [#allocation6], %s307
        %s309 = sand.u32 %s127, 1
        %s310 = smul.addr %s309, 8
        %s311 = scalar_lea.vmem [#allocation7], %s310
        // Predicated region
        $region41: #{tpu_custom_call.1} parent=31 // pred_check
          %p312 = pneg %p137
        $region42: #{tpu_custom_call.1} parent=31 // pred_check_branch
          %314 = sbr.rel (%p312) target = $region44
        $region43: #{tpu_custom_call.1} parent=31 // pred_region
          %316 = vsyncadd %s308, 0
          %s317 = sadd.s32 %s25, %s24
          %s318 = sadd.s32 %s317, %s23
          %s319 = smul.addr %s318, 8
          %s320 = scalar_lea.hbm %s3, %s319
          %s322 = sshll.u32 %s311, 4
          %s323 = int_to_ptr.vmem [resolvable:$true] %s322
          %s324 = sshll.u32 %s320, 4
          %s325 = int_to_ptr.hbm [resolvable:$true] %s324
          %327 = dma.vmem_to_hbm [thread:$0]  %s323, 128, %s325, %s308
        $region44: #{tpu_custom_call.1} parent=31 // pred_fallthru
          _
      $region32: #{tpu_custom_call.1} parent=5 // pred_fallthru
        _
      %p328 = scmp.le.s32.totalorder 2, %s13
      // Predicated region
      $region45: #{tpu_custom_call.1} parent=5 // pred_check
        %p329 = pneg %p328
      $region46: #{tpu_custom_call.1} parent=5 // pred_check_branch
        %331 = sbr.rel (%p329) target = $region48
      $region47: #{tpu_custom_call.1} parent=5 // pred_region
        %s332 = ssub.s32 %s13, 2
        // Predicated region
        $region49: #{tpu_custom_call.1} parent=47 // pred_check
          %p333 = pneg %p143
        $region50: #{tpu_custom_call.1} parent=47 // pred_check_branch
          %335 = sbr.rel (%p333) target = $region52
        $region51: #{tpu_custom_call.1} parent=47 // pred_region
          %s336 = sand.u32 %s128, 1
          %s337 = scalar_lea.sflag [#allocation6], %s336
          %s338 = sand.u32 %s128, 1
          %s339 = smul.addr %s338, 8
          %s340 = scalar_lea.vmem [#allocation7], %s339
          %342 = dma.done %s337, 128
        $region52: #{tpu_custom_call.1} parent=47 // pred_fallthru
          _
      $region48: #{tpu_custom_call.1} parent=5 // pred_fallthru
        _
    $region6: #{tpu_custom_call.1} parent=1 // loop_footer
      %s17 = sadd.s32 1, %s13
    $region7: #{tpu_custom_call.1} parent=1 // loop_footer_branch
      %12 = sbr.rel target = $region3
    $region8: #{tpu_custom_call.1} parent=1 // loop_exit
      _
    %343 = vsyncpa [#allocation5], 1
    %s344 = scalar_lea.sflag [#allocation5], 1
    %345 = vsyncpa %s344, 1
    %346 = vsyncpa [#allocation6], 1
    %s347 = scalar_lea.sflag [#allocation6], 1
    %348 = vsyncpa %s347, 1

</llo_original>
